<compile_context>
chip_gen: v7x
topology: tpu7x:2x2x1
jax: 0.10.0
libtpu: 0.0.40
codegen_flags: <defaults>
</compile_context>

<pallas_src>
import functools
import math

import jax
import jax.numpy as jnp
from jax.experimental import pallas as pl
from jax.experimental.pallas import tpu as pltpu

LANE = 128


def _round_up(x: int, m: int) -> int:
    return (x + m - 1) // m * m


def _pad2d(x, rows, cols):
    r, c = x.shape
    if r == rows and c == cols:
        return x
    return jnp.pad(x, ((0, rows - r), (0, cols - c)))


# ---------------------- fused whole-forward kernel ------------------------- #
def _fused_forward_kernel(*refs, n_layers: int, compute_dtype):
    """refs = (fea, adj, w_0..w_{L-1}, out); everything resident in VMEM."""
    fea_ref, adj_ref = refs[0], refs[1]
    w_refs = refs[2:2 + n_layers]
    out_ref = refs[2 + n_layers]

    adj = adj_ref[...]
    h = fea_ref[...]
    for li in range(n_layers):
        # support = h @ W      (MXU, f32 accumulate)
        support = jnp.dot(h, w_refs[li][...],
                          preferred_element_type=jnp.float32)
        support = support.astype(compute_dtype)
        # out = adj @ support  (MXU, f32 accumulate)
        out = jnp.dot(adj, support, preferred_element_type=jnp.float32)
        if li < n_layers - 1:
            h = jnp.maximum(out, 0.0).astype(compute_dtype)   # ReLU (VPU)
        else:
            out_ref[...] = out.astype(out_ref.dtype)


def mlfpn_gcn_forward_fused(fea, adj, weights, *, compute_dtype=jnp.bfloat16):
    """Single pallas_call computing the full forward; for small graphs."""
    if not weights:
        return fea
    n, d0 = fea.shape
    dims = [d0] + [w.shape[1] for w in weights]
    n_pad = _round_up(n, LANE)
    dpad = [_round_up(d, LANE) for d in dims]

    fea_p = _pad2d(fea, n_pad, dpad[0]).astype(compute_dtype)
    adj_p = _pad2d(adj, n_pad, n_pad).astype(compute_dtype)
    ws_p = [_pad2d(w, dpad[i], dpad[i + 1]).astype(compute_dtype)
            for i, w in enumerate(weights)]

    vmem_spec = pl.BlockSpec(memory_space=pltpu.MemorySpace.VMEM)
    kernel = functools.partial(_fused_forward_kernel, n_layers=len(weights),
                               compute_dtype=compute_dtype)
    out = pl.pallas_call(
        kernel,
        out_shape=jax.ShapeDtypeStruct((n_pad, dpad[-1]), jnp.float32),
        in_specs=[vmem_spec] * (2 + len(weights)),
        out_specs=vmem_spec,
    )(fea_p, adj_p, *ws_p)
    return out[:n, :dims[-1]]


# --------------------------- tiled per-layer path -------------------------- #
def _matmul_kernel(x_ref, w_ref, o_ref):
    o_ref[...] = jnp.dot(x_ref[...], w_ref[...],
                         preferred_element_type=jnp.float32).astype(o_ref.dtype)


def _dense_matmul(x, w, out_dtype, *, tm):
    """support = x @ w, computed ONCE (hoisted out of the adjacency tiling)."""
    m, k = x.shape
    n_out = w.shape[1]
    return pl.pallas_call(
        _matmul_kernel,
        out_shape=jax.ShapeDtypeStruct((m, n_out), out_dtype),
        grid=(m // tm,),
        in_specs=[pl.BlockSpec((tm, k), lambda i: (i, 0)),
                  pl.BlockSpec((k, n_out), lambda i: (0, 0))],
        out_specs=pl.BlockSpec((tm, n_out), lambda i: (i, 0)),
        compiler_params=pltpu.CompilerParams(
            dimension_semantics=("parallel",)),
    )(x, w)


def _adj_spmm_kernel(adj_ref, sup_ref, out_ref, acc_ref, *, apply_act: bool):
    k = pl.program_id(1)

    @pl.when(k == 0)
    def _():
        acc_ref[...] = jnp.zeros_like(acc_ref)

    acc_ref[...] += jnp.dot(adj_ref[...], sup_ref[...],
                            preferred_element_type=jnp.float32)

    @pl.when(k == pl.num_programs(1) - 1)
    def _():
        res = acc_ref[...]
        if apply_act:
            res = jnp.maximum(res, 0.0)          # ReLU in f32
        out_ref[...] = res.astype(out_ref.dtype)


def _gcn_layer_tiled(h, adj, w, *, apply_act, out_dtype, tm, tk, compute_dtype):
    """[relu](adj @ (h @ w)) on pre-padded inputs; K-tiled over adj columns."""
    n, _ = h.shape
    d_out = w.shape[1]
    support = _dense_matmul(h, w, compute_dtype, tm=tm)          # hoisted
    kernel = functools.partial(_adj_spmm_kernel, apply_act=apply_act)
    return pl.pallas_call(
        kernel,
        out_shape=jax.ShapeDtypeStruct((n, d_out), out_dtype),
        grid=(n // tm, n // tk),
        in_specs=[pl.BlockSpec((tm, tk), lambda i, k: (i, k)),
                  pl.BlockSpec((tk, d_out), lambda i, k: (k, 0))],
        out_specs=pl.BlockSpec((tm, d_out), lambda i, k: (i, 0)),
        scratch_shapes=[pltpu.VMEM((tm, d_out), jnp.float32)],
        compiler_params=pltpu.CompilerParams(
            dimension_semantics=("parallel", "arbitrary")),
    )(adj, support)


def mlfpn_gcn_forward_tiled(fea, adj, weights, *, tm=256, tk=256,
                            compute_dtype=jnp.bfloat16):
    if not weights:
        return fea
    assert tm % LANE == 0 and tk % LANE == 0
    n, d0 = fea.shape
    dims = [d0] + [w.shape[1] for w in weights]
    n_tile = tm * tk // math.gcd(tm, tk)
    n_pad = _round_up(n, n_tile)
    dpad = [_round_up(d, LANE) for d in dims]

    h = _pad2d(fea, n_pad, dpad[0]).astype(compute_dtype)
    adj_p = _pad2d(adj, n_pad, n_pad).astype(compute_dtype)
    for li, w in enumerate(weights):
        w_p = _pad2d(w, dpad[li], dpad[li + 1]).astype(compute_dtype)
        last = li == len(weights) - 1
        h = _gcn_layer_tiled(
            h, adj_p, w_p, apply_act=not last,
            out_dtype=jnp.float32 if last else compute_dtype,
            tm=tm, tk=tk, compute_dtype=compute_dtype)
    return h[:n, :dims[-1]]


# ------------------------------ dispatcher --------------------------------- #
def mlfpn_gcn_forward(fea, adj, weights, *, compute_dtype=jnp.bfloat16,
                      tm=256, tk=256):
    """MLFPN_GCN forward: ReLU after every GCN layer except the last."""
    if not weights:
        return fea
    n_pad = _round_up(fea.shape[0], LANE)
    if n_pad <= 1024:  # whole problem comfortably fits in VMEM -> fuse it all
        return mlfpn_gcn_forward_fused(fea, adj, weights,
                                       compute_dtype=compute_dtype)
    return mlfpn_gcn_forward_tiled(fea, adj, weights, tm=tm, tk=tk,
                                   compute_dtype=compute_dtype)


# ---------------------------- params & reference --------------------------- #
def init_mlfpn_gcn_params(key, dims):
    """Xavier-uniform weights, one (d_in, d_out) matrix per GCN layer."""
    weights = []
    for i in range(len(dims) - 1):
        key, sub = jax.random.split(key)
        d_in, d_out = dims[i], dims[i + 1]
        bound = (6.0 / (d_in + d_out)) ** 0.5
        weights.append(jax.random.uniform(
            sub, (d_in, d_out), jnp.float32, -bound, bound))
    return weights


def mlfpn_gcn_reference(fea, adj, weights, compute_dtype=jnp.bfloat16):
    """Plain-JAX reference mimicking the kernel numerics (bf16 MXU inputs,
    f32 accumulation, bf16 inter-layer activations)."""
    h = fea.astype(compute_dtype)
    adj_c = adj.astype(compute_dtype)
    out = h.astype(jnp.float32)
    for li, w in enumerate(weights):
        w_c = w.astype(compute_dtype)
        support = jnp.dot(h, w_c,
                          preferred_element_type=jnp.float32).astype(compute_dtype)
        out = jnp.dot(adj_c, support, preferred_element_type=jnp.float32)
        if li < len(weights) - 1:
            h = jnp.maximum(out, 0.0).astype(compute_dtype)
    return out


# ---------------------------------- main ----------------------------------- #
if __name__ == "__main__":
    key = jax.random.PRNGKey(0)
    k_fea, k_adj, k_w, k_fea2, k_adj2, k_w2 = jax.random.split(key, 6)

    def build_norm_adj(k, n):
        # Symmetric, self-looped, sym-normalized dense adjacency
        # (stand-in for the torch.sparse adj; glue done in plain JAX).
        raw = (jax.random.uniform(k, (n, n)) < 0.05).astype(jnp.float32)
        raw = jnp.maximum(raw, raw.T) + jnp.eye(n, dtype=jnp.float32)
        deg = jnp.sum(raw, axis=1)
        d_inv_sqrt = 1.0 / jnp.sqrt(deg)
        return raw * d_inv_sqrt[:, None] * d_inv_sqrt[None, :]

    # --- small problem: fused single-pallas_call path ---------------------- #
    N1, dims1 = 128, [64, 32, 16]
    fea1 = jax.random.normal(k_fea, (N1, dims1[0]), jnp.float32)
    adj1 = build_norm_adj(k_adj, N1)
    ws1 = init_mlfpn_gcn_params(k_w, dims1)

    out1 = jax.block_until_ready(mlfpn_gcn_forward(fea1, adj1, ws1))
    ref1 = mlfpn_gcn_reference(fea1, adj1, ws1)
    assert out1.shape == (N1, dims1[-1])
    assert jnp.allclose(out1, ref1, atol=3e-2, rtol=3e-2), float(
        jnp.max(jnp.abs(out1 - ref1)))

    # --- larger / ragged problem: tiled per-layer path --------------------- #
    N2, dims2 = 384, [96, 64, 48]          # exercises N and feature-dim padding
    fea2 = jax.random.normal(k_fea2, (N2, dims2[0]), jnp.float32)
    adj2 = build_norm_adj(k_adj2, N2)
    ws2 = init_mlfpn_gcn_params(k_w2, dims2)

    out2 = jax.block_until_ready(
        mlfpn_gcn_forward_tiled(fea2, adj2, ws2, tm=256, tk=256))
    ref2 = mlfpn_gcn_reference(fea2, adj2, ws2)
    assert out2.shape == (N2, dims2[-1])
    assert jnp.allclose(out2, ref2, atol=3e-2, rtol=3e-2), float(
        jnp.max(jnp.abs(out2 - ref2)))

    print("KERNEL_OK")
</pallas_src>

<mosaic_0001>
module attributes {stable_mosaic.version = 11 : i64} {
  func.func @_fused_forward_kernel(%arg0: memref<128x128xbf16, #tpu.memory_space<vmem>>, %arg1: memref<128x128xbf16, #tpu.memory_space<vmem>>, %arg2: memref<128x128xbf16, #tpu.memory_space<vmem>>, %arg3: memref<128x128xbf16, #tpu.memory_space<vmem>>, %arg4: memref<128x128xf32, #tpu.memory_space<vmem>>) attributes {dimension_semantics = [], scalar_prefetch = 0 : i64, scratch_operands = 0 : i64, tpu.core_type = #tpu.core_type<tc>} {
    %c0 = arith.constant 0 : index
    %c0_0 = arith.constant 0 : index
    %0 = vector.load %arg1[%c0, %c0_0] : memref<128x128xbf16, #tpu.memory_space<vmem>>, vector<128x128xbf16>
    %c0_1 = arith.constant 0 : index
    %c0_2 = arith.constant 0 : index
    %1 = vector.load %arg0[%c0_1, %c0_2] : memref<128x128xbf16, #tpu.memory_space<vmem>>, vector<128x128xbf16>
    %c0_3 = arith.constant 0 : index
    %c0_4 = arith.constant 0 : index
    %2 = vector.load %arg2[%c0_3, %c0_4] : memref<128x128xbf16, #tpu.memory_space<vmem>>, vector<128x128xbf16>
    %cst = arith.constant dense<0.000000e+00> : vector<128x128xf32>
    %3 = tpu.matmul %1, %2, %cst {dimension_numbers = #tpu.dot_dimension_numbers<[1], [0], [0], [1], [0, 0, 1, 1], [], []>} : vector<128x128xbf16>, vector<128x128xbf16>, vector<128x128xf32> -> vector<128x128xf32>
    %4 = arith.truncf %3 : vector<128x128xf32> to vector<128x128xbf16>
    %cst_5 = arith.constant dense<0.000000e+00> : vector<128x128xf32>
    %5 = tpu.matmul %0, %4, %cst_5 {dimension_numbers = #tpu.dot_dimension_numbers<[1], [0], [0], [1], [0, 0, 1, 1], [], []>} : vector<128x128xbf16>, vector<128x128xbf16>, vector<128x128xf32> -> vector<128x128xf32>
    %cst_6 = arith.constant 0.000000e+00 : f32
    %6 = vector.broadcast %cst_6 : f32 to vector<128x128xf32>
    %7 = arith.maximumf %5, %6 : vector<128x128xf32>
    %8 = arith.truncf %7 : vector<128x128xf32> to vector<128x128xbf16>
    %c0_7 = arith.constant 0 : index
    %c0_8 = arith.constant 0 : index
    %9 = vector.load %arg3[%c0_7, %c0_8] : memref<128x128xbf16, #tpu.memory_space<vmem>>, vector<128x128xbf16>
    %cst_9 = arith.constant dense<0.000000e+00> : vector<128x128xf32>
    %10 = tpu.matmul %8, %9, %cst_9 {dimension_numbers = #tpu.dot_dimension_numbers<[1], [0], [0], [1], [0, 0, 1, 1], [], []>} : vector<128x128xbf16>, vector<128x128xbf16>, vector<128x128xf32> -> vector<128x128xf32>
    %11 = arith.truncf %10 : vector<128x128xf32> to vector<128x128xbf16>
    %cst_10 = arith.constant dense<0.000000e+00> : vector<128x128xf32>
    %12 = tpu.matmul %0, %11, %cst_10 {dimension_numbers = #tpu.dot_dimension_numbers<[1], [0], [0], [1], [0, 0, 1, 1], [], []>} : vector<128x128xbf16>, vector<128x128xbf16>, vector<128x128xf32> -> vector<128x128xf32>
    %c0_11 = arith.constant 0 : index
    %c0_12 = arith.constant 0 : index
    %13 = vector.load %arg4[%c0_11, %c0_12] : memref<128x128xf32, #tpu.memory_space<vmem>>, vector<128x128xf32>
    tpu.vector_store %arg4[%c0_11, %c0_12], %12 {strides = array<i32>} : memref<128x128xf32, #tpu.memory_space<vmem>>, vector<128x128xf32>,
    return
  }
}

</mosaic_0001>

<llo_original>
// kernel: tpu_custom_call.1
$region0: #{tpu_custom_call.1}
  #allocation0 [shape = 'u32[]', space=smem, size = 0x4, offset = 0x4, fixed_abs, tag = 'smem constant byte address 0x4 - core index']
  #allocation1 [shape = 'u32[144,128]{1,0:T(1,128)}', space=vmem, size = 0x12000, scoped, tag = 'internal scratch']
  %s0 = inlined_call_operand.hbm [shape: bf16[128,128], index: 0, kind: input, shape index: {}]
  %s1 = inlined_call_operand.hbm [shape: bf16[128,128], index: 1, kind: input, shape index: {}]
  %s2 = inlined_call_operand.hbm [shape: bf16[128,128], index: 2, kind: input, shape index: {}]
  %s3 = inlined_call_operand.hbm [shape: bf16[128,128], index: 3, kind: input, shape index: {}]
  %s4 = inlined_call_operand.hbm [shape: f32[128,128], index: 4, kind: output, shape index: {}]
  %s5 = sld [smem:[#allocation0]]
  $region42: #{tpu_custom_call.1} parent=0
    _
  %s7 = ssub.s32 1, %s5
  %s8 = scalar_select 0, %s7, %s5
  $region1: #{tpu_custom_call.1} parent=0
    #allocation2 [shape = 'u8[32768]{0}', space=vmem, size = 0x8000, scoped, tag = 'input window, operand 0, single buffered']
    #allocation3 [shape = 's32[1]{0}', space=sflag, size = 0x4, scoped, tag = 'scoped memory for tpu_custom_call.1']
    #allocation4 [shape = 's32[1]{0}', space=sflag, size = 0x4, scoped, tag = 'scoped memory for tpu_custom_call.1']
    #allocation5 [shape = 'u8[32768]{0}', space=vmem, size = 0x8000, scoped, tag = 'input window, operand 1, single buffered']
    #allocation6 [shape = 's32[1]{0}', space=sflag, size = 0x4, scoped, tag = 'scoped memory for tpu_custom_call.1']
    #allocation7 [shape = 'u8[32768]{0}', space=vmem, size = 0x8000, scoped, tag = 'input window, operand 2, single buffered']
    #allocation8 [shape = 'u8[32768]{0}', space=vmem, size = 0x8000, scoped, tag = 'input window, operand 3, single buffered']
    #allocation9 [shape = 's32[1]{0}', space=sflag, size = 0x4, scoped, tag = 'scoped memory for tpu_custom_call.1']
    #allocation10 [shape = 'u8[65536]{0}', space=vmem, size = 0x10000, scoped, tag = 'output window, operand 0, single buffered']
    %9 = vsyncpa [#allocation3], 0
    %10 = vsyncpa [#allocation6], 0
    %11 = vsyncpa [#allocation9], 0
    %12 = vsyncpa [#allocation4], 0
    // Predicated region
    $region2: #{tpu_custom_call.1} parent=1 // pred_check
      _
    $region3: #{tpu_custom_call.1} parent=1 // pred_check_branch
      %14 = sbr.rel (0) target = $region5
    $region4: #{tpu_custom_call.1} parent=1 // pred_region
      %s16 = ssub.s32 1024, 1024
      %17 = vsyncadd [#allocation3], %s16
      %s18 = sshll.u32 [#allocation2], 4
      %s19 = int_to_ptr.vmem [resolvable:$true] %s18
      %24 = dma.hbm_to_vmem [thread:$0]  %s0, 1024, %s19, [#allocation3], 64, 64, 4
    $region5: #{tpu_custom_call.1} parent=1 // pred_fallthru
      _
    // Predicated region
    $region6: #{tpu_custom_call.1} parent=1 // pred_check
      _
    $region7: #{tpu_custom_call.1} parent=1 // pred_check_branch
      %26 = sbr.rel (0) target = $region9
    $region8: #{tpu_custom_call.1} parent=1 // pred_region
      %s28 = ssub.s32 1024, 1024
      %29 = vsyncadd [#allocation6], %s28
      %s30 = sshll.u32 [#allocation5], 4
      %s31 = int_to_ptr.vmem [resolvable:$true] %s30
      %36 = dma.hbm_to_vmem [thread:$0]  %s1, 1024, %s31, [#allocation6], 64, 64, 4
    $region9: #{tpu_custom_call.1} parent=1 // pred_fallthru
      _
    // Predicated region
    $region10: #{tpu_custom_call.1} parent=1 // pred_check
      _
    $region11: #{tpu_custom_call.1} parent=1 // pred_check_branch
      %38 = sbr.rel (0) target = $region13
    $region12: #{tpu_custom_call.1} parent=1 // pred_region
      %s40 = ssub.s32 1024, 1024
      %41 = vsyncadd [#allocation6], %s40
      %s42 = sshll.u32 [#allocation7], 4
      %s43 = int_to_ptr.vmem [resolvable:$true] %s42
      %48 = dma.hbm_to_vmem [thread:$0]  %s2, 1024, %s43, [#allocation6], 64, 64, 4
    $region13: #{tpu_custom_call.1} parent=1 // pred_fallthru
      _
    // Predicated region
    $region14: #{tpu_custom_call.1} parent=1 // pred_check
      _
    $region15: #{tpu_custom_call.1} parent=1 // pred_check_branch
      %50 = sbr.rel (0) target = $region17
    $region16: #{tpu_custom_call.1} parent=1 // pred_region
      %s52 = ssub.s32 1024, 1024
      %53 = vsyncadd [#allocation9], %s52
      %s54 = sshll.u32 [#allocation8], 4
      %s55 = int_to_ptr.vmem [resolvable:$true] %s54
      %60 = dma.hbm_to_vmem [thread:$0]  %s3, 1024, %s55, [#allocation9], 64, 64, 4
    $region17: #{tpu_custom_call.1} parent=1 // pred_fallthru
      _
    // Predicated region
    $region18: #{tpu_custom_call.1} parent=1 // pred_check
      _
    $region19: #{tpu_custom_call.1} parent=1 // pred_check_branch
      %62 = sbr.rel (0) target = $region21
    $region20: #{tpu_custom_call.1} parent=1 // pred_region
      %63 = dma.done [#allocation3], 1024
    $region21: #{tpu_custom_call.1} parent=1 // pred_fallthru
      _
    // Predicated region
    $region22: #{tpu_custom_call.1} parent=1 // pred_check
      _
    $region23: #{tpu_custom_call.1} parent=1 // pred_check_branch
      %65 = sbr.rel (0) target = $region25
    $region24: #{tpu_custom_call.1} parent=1 // pred_region
      %66 = dma.done [#allocation6], 1024
    $region25: #{tpu_custom_call.1} parent=1 // pred_fallthru
      _
    // Predicated region
    $region26: #{tpu_custom_call.1} parent=1 // pred_check
      _
    $region27: #{tpu_custom_call.1} parent=1 // pred_check_branch
      %68 = sbr.rel (0) target = $region29
    $region28: #{tpu_custom_call.1} parent=1 // pred_region
      %69 = dma.done [#allocation6], 1024
    $region29: #{tpu_custom_call.1} parent=1 // pred_fallthru
      _
    // Predicated region
    $region30: #{tpu_custom_call.1} parent=1 // pred_check
      _
    $region31: #{tpu_custom_call.1} parent=1 // pred_check_branch
      %71 = sbr.rel (0) target = $region33
    $region32: #{tpu_custom_call.1} parent=1 // pred_region
      %72 = dma.done [#allocation9], 1024
    $region33: #{tpu_custom_call.1} parent=1 // pred_fallthru
      _
    %v74 = vld [vmem:[#allocation5] sm:$0xf]
    %v75 = vld [vmem:[#allocation5 + $0x4] sm:$0xf]
    %v76 = vld [vmem:[#allocation5 + $0x8] sm:$0xf]
    %v77 = vld [vmem:[#allocation5 + $0xc] sm:$0xf]
    %v78 = vld [vmem:[#allocation5 + $0x10] sm:$0xf]
    %v79 = vld [vmem:[#allocation5 + $0x14] sm:$0xf]
    %v80 = vld [vmem:[#allocation5 + $0x18] sm:$0xf]
    %v81 = vld [vmem:[#allocation5 + $0x1c] sm:$0xf]
    %v82 = vld [vmem:[#allocation5 + $0x20] sm:$0xf]
    %v83 = vld [vmem:[#allocation5 + $0x24] sm:$0xf]
    %v84 = vld [vmem:[#allocation5 + $0x28] sm:$0xf]
    %v85 = vld [vmem:[#allocation5 + $0x2c] sm:$0xf]
    %v86 = vld [vmem:[#allocation5 + $0x30] sm:$0xf]
    %v87 = vld [vmem:[#allocation5 + $0x34] sm:$0xf]
    %v88 = vld [vmem:[#allocation5 + $0x38] sm:$0xf]
    %v89 = vld [vmem:[#allocation5 + $0x3c] sm:$0xf]
    %v90 = vld [vmem:[#allocation2] sm:$0xf]
    %v91 = vld [vmem:[#allocation2 + $0x4] sm:$0xf]
    %v92 = vld [vmem:[#allocation2 + $0x8] sm:$0xf]
    %v93 = vld [vmem:[#allocation2 + $0xc] sm:$0xf]
    %v94 = vld [vmem:[#allocation2 + $0x10] sm:$0xf]
    %v95 = vld [vmem:[#allocation2 + $0x14] sm:$0xf]
    %v96 = vld [vmem:[#allocation2 + $0x18] sm:$0xf]
    %v97 = vld [vmem:[#allocation2 + $0x1c] sm:$0xf]
    %v98 = vld [vmem:[#allocation2 + $0x20] sm:$0xf]
    %v99 = vld [vmem:[#allocation2 + $0x24] sm:$0xf]
    %v100 = vld [vmem:[#allocation2 + $0x28] sm:$0xf]
    %v101 = vld [vmem:[#allocation2 + $0x2c] sm:$0xf]
    %v102 = vld [vmem:[#allocation2 + $0x30] sm:$0xf]
    %v103 = vld [vmem:[#allocation2 + $0x34] sm:$0xf]
    %v104 = vld [vmem:[#allocation2 + $0x38] sm:$0xf]
    %v105 = vld [vmem:[#allocation2 + $0x3c] sm:$0xf]
    %v106 = vld [vmem:[#allocation7] sm:$0xf]
    %v107 = vld [vmem:[#allocation7 + $0x4] sm:$0xf]
    %v108 = vld [vmem:[#allocation7 + $0x8] sm:$0xf]
    %v109 = vld [vmem:[#allocation7 + $0xc] sm:$0xf]
    %v110 = vld [vmem:[#allocation7 + $0x10] sm:$0xf]
    %v111 = vld [vmem:[#allocation7 + $0x14] sm:$0xf]
    %v112 = vld [vmem:[#allocation7 + $0x18] sm:$0xf]
    %v113 = vld [vmem:[#allocation7 + $0x1c] sm:$0xf]
    %v114 = vld [vmem:[#allocation7 + $0x20] sm:$0xf]
    %v115 = vld [vmem:[#allocation7 + $0x24] sm:$0xf]
    %v116 = vld [vmem:[#allocation7 + $0x28] sm:$0xf]
    %v117 = vld [vmem:[#allocation7 + $0x2c] sm:$0xf]
    %v118 = vld [vmem:[#allocation7 + $0x30] sm:$0xf]
    %v119 = vld [vmem:[#allocation7 + $0x34] sm:$0xf]
    %v120 = vld [vmem:[#allocation7 + $0x38] sm:$0xf]
    %v121 = vld [vmem:[#allocation7 + $0x3c] sm:$0xf]
    %v138 = vunpack.c.l.b16 %v90
    %v139 = vunpack.c.l.b16 %v91
    %v140 = vunpack.c.l.b16 %v92
    %v141 = vunpack.c.l.b16 %v93
    %v142 = vunpack.c.l.b16 %v94
    %v143 = vunpack.c.l.b16 %v95
    %v144 = vunpack.c.l.b16 %v96
    %v145 = vunpack.c.l.b16 %v97
    %v146 = vunpack.c.l.b16 %v98
    %v147 = vunpack.c.l.b16 %v99
    %v148 = vunpack.c.l.b16 %v100
    %v149 = vunpack.c.l.b16 %v101
    %v150 = vunpack.c.l.b16 %v102
    %v151 = vunpack.c.l.b16 %v103
    %v152 = vunpack.c.l.b16 %v104
    %v153 = vunpack.c.l.b16 %v105
    %v154 = vpack.c.b16 %v139, %v138
    %v155 = vpack.c.b16 %v141, %v140
    %v156 = vpack.c.b16 %v143, %v142
    %v157 = vpack.c.b16 %v145, %v144
    %v158 = vpack.c.b16 %v147, %v146
    %v159 = vpack.c.b16 %v149, %v148
    %v160 = vpack.c.b16 %v151, %v150
    %v161 = vpack.c.b16 %v153, %v152
    %v186 = vunpack.c.l.b16 %v106
    %v187 = vunpack.c.l.b16 %v107
    %v188 = vunpack.c.l.b16 %v108
    %v189 = vunpack.c.l.b16 %v109
    %v190 = vunpack.c.l.b16 %v110
    %v191 = vunpack.c.l.b16 %v111
    %v192 = vunpack.c.l.b16 %v112
    %v193 = vunpack.c.l.b16 %v113
    %v194 = vunpack.c.l.b16 %v114
    %v195 = vunpack.c.l.b16 %v115
    %v196 = vunpack.c.l.b16 %v116
    %v197 = vunpack.c.l.b16 %v117
    %v198 = vunpack.c.l.b16 %v118
    %v199 = vunpack.c.l.b16 %v119
    %v200 = vunpack.c.l.b16 %v120
    %v201 = vunpack.c.l.b16 %v121
    %v202 = vpack.c.b16 %v187, %v186
    %v203 = vpack.c.b16 %v189, %v188
    %v204 = vpack.c.b16 %v191, %v190
    %v205 = vpack.c.b16 %v193, %v192
    %v206 = vpack.c.b16 %v195, %v194
    %v207 = vpack.c.b16 %v197, %v196
    %v208 = vpack.c.b16 %v199, %v198
    %v209 = vpack.c.b16 %v201, %v200
    %218 = vmatprep.subr.bf16.mxu0 0
    %219 = vmatpush1.bf16.msra.mxu0 %v202
    %220 = vmatprep.subr.bf16.mxu0 0
    %221 = vmatpush1.bf16.msra.mxu0 %v203
    %222 = vmatprep.subr.bf16.mxu0 0
    %223 = vmatpush1.bf16.msra.mxu0 %v204
    %224 = vmatprep.subr.bf16.mxu0 0
    %225 = vmatpush1.bf16.msra.mxu0 %v205
    %226 = vmatprep.subr.bf16.mxu0 0
    %227 = vmatpush1.bf16.msra.mxu0 %v206
    %228 = vmatprep.subr.bf16.mxu0 0
    %229 = vmatpush1.bf16.msra.mxu0 %v207
    %230 = vmatprep.subr.bf16.mxu0 0
    %231 = vmatpush1.bf16.msra.mxu0 %v208
    %232 = vmatprep.subr.bf16.mxu0 0
    %233 = vmatpush1.bf16.msra.mxu0 %v209
    %234 = vmatprep.subr.bf16.mxu0 0
    %235 = vmatpush1.bf16.msra.mxu0 0
    %236 = vmatprep.subr.bf16.mxu0 0
    %237 = vmatpush1.bf16.msra.mxu0 0
    %238 = vmatprep.subr.bf16.mxu0 0
    %239 = vmatpush1.bf16.msra.mxu0 0
    %240 = vmatprep.subr.bf16.mxu0 0
    %241 = vmatpush1.bf16.msra.mxu0 0
    %242 = vmatprep.subr.bf16.mxu0 0
    %243 = vmatpush1.bf16.msra.mxu0 0
    %244 = vmatprep.subr.bf16.mxu0 0
    %245 = vmatpush1.bf16.msra.mxu0 0
    %246 = vmatprep.subr.bf16.mxu0 0
    %247 = vmatpush1.bf16.msra.mxu0 0
    %248 = vmatprep.subr.bf16.mxu0 0
    %249 = vmatpush1.bf16.msra.mxu0 0
    %250 = vmatprep.mubr.bf16.mxu0 0
    %251 = vmatmul.mubr.bf16.gmra.mrb[0].mxu0 %v154
    %v252 = vpop.f32.mrb[0].mxu0
    %v253 = vadd.f32 0.0, %v252
    %v254 = vpop.f32.mrb[0].mxu0
    %v255 = vpop.f32.mrb[0].mxu0
    %v256 = vadd.f32 0.0, %v255
    %v257 = vpop.f32.mrb[0].mxu0
    %258 = vmatprep.mubr.bf16.mxu0 0
    %259 = vmatmul.mubr.bf16.gmra.mrb[0].mxu0 %v155
    %v260 = vpop.f32.mrb[0].mxu0
    %v261 = vadd.f32 0.0, %v260
    %v262 = vpop.f32.mrb[0].mxu0
    %v263 = vpop.f32.mrb[0].mxu0
    %v264 = vadd.f32 0.0, %v263
    %v265 = vpop.f32.mrb[0].mxu0
    %266 = vmatprep.mubr.bf16.mxu0 0
    %267 = vmatmul.mubr.bf16.gmra.mrb[0].mxu0 %v156
    %v268 = vpop.f32.mrb[0].mxu0
    %v269 = vadd.f32 0.0, %v268
    %v270 = vpop.f32.mrb[0].mxu0
    %v271 = vpop.f32.mrb[0].mxu0
    %v272 = vadd.f32 0.0, %v271
    %v273 = vpop.f32.mrb[0].mxu0
    %274 = vmatprep.mubr.bf16.mxu0 0
    %275 = vmatmul.mubr.bf16.gmra.mrb[0].mxu0 %v157
    %v276 = vpop.f32.mrb[0].mxu0
    %v277 = vadd.f32 0.0, %v276
    %v278 = vpop.f32.mrb[0].mxu0
    %v279 = vpop.f32.mrb[0].mxu0
    %v280 = vadd.f32 0.0, %v279
    %v281 = vpop.f32.mrb[0].mxu0
    %282 = vmatprep.mubr.bf16.mxu0 0
    %283 = vmatmul.mubr.bf16.gmra.mrb[0].mxu0 %v158
    %v284 = vpop.f32.mrb[0].mxu0
    %v285 = vadd.f32 0.0, %v284
    %v286 = vpop.f32.mrb[0].mxu0
    %v287 = vpop.f32.mrb[0].mxu0
    %v288 = vadd.f32 0.0, %v287
    %v289 = vpop.f32.mrb[0].mxu0
    %290 = vmatprep.mubr.bf16.mxu0 0
    %291 = vmatmul.mubr.bf16.gmra.mrb[0].mxu0 %v159
    %v292 = vpop.f32.mrb[0].mxu0
    %v293 = vadd.f32 0.0, %v292
    %v294 = vpop.f32.mrb[0].mxu0
    %v295 = vpop.f32.mrb[0].mxu0
    %v296 = vadd.f32 0.0, %v295
    %v297 = vpop.f32.mrb[0].mxu0
    %298 = vmatprep.mubr.bf16.mxu0 0
    %299 = vmatmul.mubr.bf16.gmra.mrb[0].mxu0 %v160
    %v300 = vpop.f32.mrb[0].mxu0
    %v301 = vadd.f32 0.0, %v300
    %v302 = vpop.f32.mrb[0].mxu0
    %v303 = vpop.f32.mrb[0].mxu0
    %v304 = vadd.f32 0.0, %v303
    %v305 = vpop.f32.mrb[0].mxu0
    %306 = vmatprep.mubr.bf16.mxu0 0
    %307 = vmatmul.mubr.bf16.gmra.mrb[0].mxu0 %v161
    %v308 = vpop.f32.mrb[0].mxu0
    %v309 = vadd.f32 0.0, %v308
    %v310 = vpop.f32.mrb[0].mxu0
    %v311 = vpop.f32.mrb[0].mxu0
    %v312 = vadd.f32 0.0, %v311
    %v313 = vpop.f32.mrb[0].mxu0
    %314 = vdwg.mxu0
    %v315 = vpack.c.bf16 %v256, %v253
    %v316 = vpack.c.bf16 %v264, %v261
    %v317 = vpack.c.bf16 %v272, %v269
    %v318 = vpack.c.bf16 %v280, %v277
    %v319 = vpack.c.bf16 %v288, %v285
    %v320 = vpack.c.bf16 %v296, %v293
    %v321 = vpack.c.bf16 %v304, %v301
    %v322 = vpack.c.bf16 %v312, %v309
    %v339 = vunpack.c.l.b16 %v74
    %v340 = vunpack.c.l.b16 %v75
    %v341 = vunpack.c.l.b16 %v76
    %v342 = vunpack.c.l.b16 %v77
    %v343 = vunpack.c.l.b16 %v78
    %v344 = vunpack.c.l.b16 %v79
    %v345 = vunpack.c.l.b16 %v80
    %v346 = vunpack.c.l.b16 %v81
    %v347 = vunpack.c.l.b16 %v82
    %v348 = vunpack.c.l.b16 %v83
    %v349 = vunpack.c.l.b16 %v84
    %v350 = vunpack.c.l.b16 %v85
    %v351 = vunpack.c.l.b16 %v86
    %v352 = vunpack.c.l.b16 %v87
    %v353 = vunpack.c.l.b16 %v88
    %v354 = vunpack.c.l.b16 %v89
    %v355 = vpack.c.b16 %v340, %v339
    %v356 = vpack.c.b16 %v342, %v341
    %v357 = vpack.c.b16 %v344, %v343
    %v358 = vpack.c.b16 %v346, %v345
    %v359 = vpack.c.b16 %v348, %v347
    %v360 = vpack.c.b16 %v350, %v349
    %v361 = vpack.c.b16 %v352, %v351
    %v362 = vpack.c.b16 %v354, %v353
    %371 = vmatprep.subr.bf16.mxu0 0
    %372 = vmatpush1.bf16.msra.mxu0 %v315
    %373 = vmatprep.subr.bf16.mxu0 0
    %374 = vmatpush1.bf16.msra.mxu0 %v316
    %375 = vmatprep.subr.bf16.mxu0 0
    %376 = vmatpush1.bf16.msra.mxu0 %v317
    %377 = vmatprep.subr.bf16.mxu0 0
    %378 = vmatpush1.bf16.msra.mxu0 %v318
    %379 = vmatprep.subr.bf16.mxu0 0
    %380 = vmatpush1.bf16.msra.mxu0 %v319
    %381 = vmatprep.subr.bf16.mxu0 0
    %382 = vmatpush1.bf16.msra.mxu0 %v320
    %383 = vmatprep.subr.bf16.mxu0 0
    %384 = vmatpush1.bf16.msra.mxu0 %v321
    %385 = vmatprep.subr.bf16.mxu0 0
    %386 = vmatpush1.bf16.msra.mxu0 %v322
    %387 = vmatprep.subr.bf16.mxu0 0
    %388 = vmatpush1.bf16.msra.mxu0 0
    %389 = vmatprep.subr.bf16.mxu0 0
    %390 = vmatpush1.bf16.msra.mxu0 0
    %391 = vmatprep.subr.bf16.mxu0 0
    %392 = vmatpush1.bf16.msra.mxu0 0
    %393 = vmatprep.subr.bf16.mxu0 0
    %394 = vmatpush1.bf16.msra.mxu0 0
    %395 = vmatprep.subr.bf16.mxu0 0
    %396 = vmatpush1.bf16.msra.mxu0 0
    %397 = vmatprep.subr.bf16.mxu0 0
    %398 = vmatpush1.bf16.msra.mxu0 0
    %399 = vmatprep.subr.bf16.mxu0 0
    %400 = vmatpush1.bf16.msra.mxu0 0
    %401 = vmatprep.subr.bf16.mxu0 0
    %402 = vmatpush1.bf16.msra.mxu0 0
    %403 = vmatprep.mubr.bf16.mxu0 0
    %404 = vmatmul.mubr.bf16.gmra.mrb[0].mxu0 %v355
    %v405 = vpop.f32.mrb[0].mxu0
    %v406 = vadd.f32 0.0, %v405
    %v407 = vpop.f32.mrb[0].mxu0
    %v408 = vpop.f32.mrb[0].mxu0
    %v409 = vadd.f32 0.0, %v408
    %v410 = vpop.f32.mrb[0].mxu0
    %411 = vmatprep.mubr.bf16.mxu0 0
    %412 = vmatmul.mubr.bf16.gmra.mrb[0].mxu0 %v356
    %v413 = vpop.f32.mrb[0].mxu0
    %v414 = vadd.f32 0.0, %v413
    %v415 = vpop.f32.mrb[0].mxu0
    %v416 = vpop.f32.mrb[0].mxu0
    %v417 = vadd.f32 0.0, %v416
    %v418 = vpop.f32.mrb[0].mxu0
    %419 = vmatprep.mubr.bf16.mxu0 0
    %420 = vmatmul.mubr.bf16.gmra.mrb[0].mxu0 %v357
    %v421 = vpop.f32.mrb[0].mxu0
    %v422 = vadd.f32 0.0, %v421
    %v423 = vpop.f32.mrb[0].mxu0
    %v424 = vpop.f32.mrb[0].mxu0
    %v425 = vadd.f32 0.0, %v424
    %v426 = vpop.f32.mrb[0].mxu0
    %427 = vmatprep.mubr.bf16.mxu0 0
    %428 = vmatmul.mubr.bf16.gmra.mrb[0].mxu0 %v358
    %v429 = vpop.f32.mrb[0].mxu0
    %v430 = vadd.f32 0.0, %v429
    %v431 = vpop.f32.mrb[0].mxu0
    %v432 = vpop.f32.mrb[0].mxu0
    %v433 = vadd.f32 0.0, %v432
    %v434 = vpop.f32.mrb[0].mxu0
    %435 = vmatprep.mubr.bf16.mxu0 0
    %436 = vmatmul.mubr.bf16.gmra.mrb[0].mxu0 %v359
    %v437 = vpop.f32.mrb[0].mxu0
    %v438 = vadd.f32 0.0, %v437
    %v439 = vpop.f32.mrb[0].mxu0
    %v440 = vpop.f32.mrb[0].mxu0
    %v441 = vadd.f32 0.0, %v440
    %v442 = vpop.f32.mrb[0].mxu0
    %443 = vmatprep.mubr.bf16.mxu0 0
    %444 = vmatmul.mubr.bf16.gmra.mrb[0].mxu0 %v360
    %v445 = vpop.f32.mrb[0].mxu0
    %v446 = vadd.f32 0.0, %v445
    %v447 = vpop.f32.mrb[0].mxu0
    %v448 = vpop.f32.mrb[0].mxu0
    %v449 = vadd.f32 0.0, %v448
    %v450 = vpop.f32.mrb[0].mxu0
    %451 = vmatprep.mubr.bf16.mxu0 0
    %452 = vmatmul.mubr.bf16.gmra.mrb[0].mxu0 %v361
    %v453 = vpop.f32.mrb[0].mxu0
    %v454 = vadd.f32 0.0, %v453
    %v455 = vpop.f32.mrb[0].mxu0
    %v456 = vpop.f32.mrb[0].mxu0
    %v457 = vadd.f32 0.0, %v456
    %v458 = vpop.f32.mrb[0].mxu0
    %459 = vmatprep.mubr.bf16.mxu0 0
    %460 = vmatmul.mubr.bf16.gmra.mrb[0].mxu0 %v362
    %v461 = vpop.f32.mrb[0].mxu0
    %v462 = vadd.f32 0.0, %v461
    %v463 = vpop.f32.mrb[0].mxu0
    %v464 = vpop.f32.mrb[0].mxu0
    %v465 = vadd.f32 0.0, %v464
    %v466 = vpop.f32.mrb[0].mxu0
    %467 = vdwg.mxu0
    %v468 = vmax.f32 %v406, 0.0
    %v469 = vmax.f32 %v409, 0.0
    %v470 = vmax.f32 %v414, 0.0
    %v471 = vmax.f32 %v417, 0.0
    %v472 = vmax.f32 %v422, 0.0
    %v473 = vmax.f32 %v425, 0.0
    %v474 = vmax.f32 %v430, 0.0
    %v475 = vmax.f32 %v433, 0.0
    %v476 = vmax.f32 %v438, 0.0
    %v477 = vmax.f32 %v441, 0.0
    %v478 = vmax.f32 %v446, 0.0
    %v479 = vmax.f32 %v449, 0.0
    %v480 = vmax.f32 %v454, 0.0
    %v481 = vmax.f32 %v457, 0.0
    %v482 = vmax.f32 %v462, 0.0
    %v483 = vmax.f32 %v465, 0.0
    %v484 = vpack.c.bf16 %v469, %v468
    %v485 = vpack.c.bf16 %v471, %v470
    %v486 = vpack.c.bf16 %v473, %v472
    %v487 = vpack.c.bf16 %v475, %v474
    %v488 = vpack.c.bf16 %v477, %v476
    %v489 = vpack.c.bf16 %v479, %v478
    %v490 = vpack.c.bf16 %v481, %v480
    %v491 = vpack.c.bf16 %v483, %v482
    %v492 = vld [vmem:[#allocation8] sm:$0xf]
    %v493 = vld [vmem:[#allocation8 + $0x4] sm:$0xf]
    %v494 = vld [vmem:[#allocation8 + $0x8] sm:$0xf]
    %v495 = vld [vmem:[#allocation8 + $0xc] sm:$0xf]
    %v496 = vld [vmem:[#allocation8 + $0x10] sm:$0xf]
    %v497 = vld [vmem:[#allocation8 + $0x14] sm:$0xf]
    %v498 = vld [vmem:[#allocation8 + $0x18] sm:$0xf]
    %v499 = vld [vmem:[#allocation8 + $0x1c] sm:$0xf]
    %v500 = vld [vmem:[#allocation8 + $0x20] sm:$0xf]
    %v501 = vld [vmem:[#allocation8 + $0x24] sm:$0xf]
    %v502 = vld [vmem:[#allocation8 + $0x28] sm:$0xf]
    %v503 = vld [vmem:[#allocation8 + $0x2c] sm:$0xf]
    %v504 = vld [vmem:[#allocation8 + $0x30] sm:$0xf]
    %v505 = vld [vmem:[#allocation8 + $0x34] sm:$0xf]
    %v506 = vld [vmem:[#allocation8 + $0x38] sm:$0xf]
    %v507 = vld [vmem:[#allocation8 + $0x3c] sm:$0xf]
    %v524 = vunpack.c.l.b16 %v492
    %v525 = vunpack.c.l.b16 %v493
    %v526 = vunpack.c.l.b16 %v494
    %v527 = vunpack.c.l.b16 %v495
    %v528 = vunpack.c.l.b16 %v496
    %v529 = vunpack.c.l.b16 %v497
    %v530 = vunpack.c.l.b16 %v498
    %v531 = vunpack.c.l.b16 %v499
    %v532 = vunpack.c.l.b16 %v500
    %v533 = vunpack.c.l.b16 %v501
    %v534 = vunpack.c.l.b16 %v502
    %v535 = vunpack.c.l.b16 %v503
    %v536 = vunpack.c.l.b16 %v504
    %v537 = vunpack.c.l.b16 %v505
    %v538 = vunpack.c.l.b16 %v506
    %v539 = vunpack.c.l.b16 %v507
    %v540 = vpack.c.b16 %v525, %v524
    %v541 = vpack.c.b16 %v527, %v526
    %v542 = vpack.c.b16 %v529, %v528
    %v543 = vpack.c.b16 %v531, %v530
    %v544 = vpack.c.b16 %v533, %v532
    %v545 = vpack.c.b16 %v535, %v534
    %v546 = vpack.c.b16 %v537, %v536
    %v547 = vpack.c.b16 %v539, %v538
    %556 = vmatprep.subr.bf16.mxu0 0
    %557 = vmatpush1.bf16.msra.mxu0 %v540
    %558 = vmatprep.subr.bf16.mxu0 0
    %559 = vmatpush1.bf16.msra.mxu0 %v541
    %560 = vmatprep.subr.bf16.mxu0 0
    %561 = vmatpush1.bf16.msra.mxu0 %v542
    %562 = vmatprep.subr.bf16.mxu0 0
    %563 = vmatpush1.bf16.msra.mxu0 %v543
    %564 = vmatprep.subr.bf16.mxu0 0
    %565 = vmatpush1.bf16.msra.mxu0 %v544
    %566 = vmatprep.subr.bf16.mxu0 0
    %567 = vmatpush1.bf16.msra.mxu0 %v545
    %568 = vmatprep.subr.bf16.mxu0 0
    %569 = vmatpush1.bf16.msra.mxu0 %v546
    %570 = vmatprep.subr.bf16.mxu0 0
    %571 = vmatpush1.bf16.msra.mxu0 %v547
    %572 = vmatprep.subr.bf16.mxu0 0
    %573 = vmatpush1.bf16.msra.mxu0 0
    %574 = vmatprep.subr.bf16.mxu0 0
    %575 = vmatpush1.bf16.msra.mxu0 0
    %576 = vmatprep.subr.bf16.mxu0 0
    %577 = vmatpush1.bf16.msra.mxu0 0
    %578 = vmatprep.subr.bf16.mxu0 0
    %579 = vmatpush1.bf16.msra.mxu0 0
    %580 = vmatprep.subr.bf16.mxu0 0
    %581 = vmatpush1.bf16.msra.mxu0 0
    %582 = vmatprep.subr.bf16.mxu0 0
    %583 = vmatpush1.bf16.msra.mxu0 0
    %584 = vmatprep.subr.bf16.mxu0 0
    %585 = vmatpush1.bf16.msra.mxu0 0
    %586 = vmatprep.subr.bf16.mxu0 0
    %587 = vmatpush1.bf16.msra.mxu0 0
    %588 = vmatprep.mubr.bf16.mxu0 0
    %589 = vmatmul.mubr.bf16.gmra.mrb[0].mxu0 %v484
    %v590 = vpop.f32.mrb[0].mxu0
    %v591 = vadd.f32 0.0, %v590
    %v592 = vpop.f32.mrb[0].mxu0
    %v593 = vpop.f32.mrb[0].mxu0
    %v594 = vadd.f32 0.0, %v593
    %v595 = vpop.f32.mrb[0].mxu0
    %596 = vmatprep.mubr.bf16.mxu0 0
    %597 = vmatmul.mubr.bf16.gmra.mrb[0].mxu0 %v485
    %v598 = vpop.f32.mrb[0].mxu0
    %v599 = vadd.f32 0.0, %v598
    %v600 = vpop.f32.mrb[0].mxu0
    %v601 = vpop.f32.mrb[0].mxu0
    %v602 = vadd.f32 0.0, %v601
    %v603 = vpop.f32.mrb[0].mxu0
    %604 = vmatprep.mubr.bf16.mxu0 0
    %605 = vmatmul.mubr.bf16.gmra.mrb[0].mxu0 %v486
    %v606 = vpop.f32.mrb[0].mxu0
    %v607 = vadd.f32 0.0, %v606
    %v608 = vpop.f32.mrb[0].mxu0
    %v609 = vpop.f32.mrb[0].mxu0
    %v610 = vadd.f32 0.0, %v609
    %v611 = vpop.f32.mrb[0].mxu0
    %612 = vmatprep.mubr.bf16.mxu0 0
    %613 = vmatmul.mubr.bf16.gmra.mrb[0].mxu0 %v487
    %v614 = vpop.f32.mrb[0].mxu0
    %v615 = vadd.f32 0.0, %v614
    %v616 = vpop.f32.mrb[0].mxu0
    %v617 = vpop.f32.mrb[0].mxu0
    %v618 = vadd.f32 0.0, %v617
    %v619 = vpop.f32.mrb[0].mxu0
    %620 = vmatprep.mubr.bf16.mxu0 0
    %621 = vmatmul.mubr.bf16.gmra.mrb[0].mxu0 %v488
    %v622 = vpop.f32.mrb[0].mxu0
    %v623 = vadd.f32 0.0, %v622
    %v624 = vpop.f32.mrb[0].mxu0
    %v625 = vpop.f32.mrb[0].mxu0
    %v626 = vadd.f32 0.0, %v625
    %v627 = vpop.f32.mrb[0].mxu0
    %628 = vmatprep.mubr.bf16.mxu0 0
    %629 = vmatmul.mubr.bf16.gmra.mrb[0].mxu0 %v489
    %v630 = vpop.f32.mrb[0].mxu0
    %v631 = vadd.f32 0.0, %v630
    %v632 = vpop.f32.mrb[0].mxu0
    %v633 = vpop.f32.mrb[0].mxu0
    %v634 = vadd.f32 0.0, %v633
    %v635 = vpop.f32.mrb[0].mxu0
    %636 = vmatprep.mubr.bf16.mxu0 0
    %637 = vmatmul.mubr.bf16.gmra.mrb[0].mxu0 %v490
    %v638 = vpop.f32.mrb[0].mxu0
    %v639 = vadd.f32 0.0, %v638
    %v640 = vpop.f32.mrb[0].mxu0
    %v641 = vpop.f32.mrb[0].mxu0
    %v642 = vadd.f32 0.0, %v641
    %v643 = vpop.f32.mrb[0].mxu0
    %644 = vmatprep.mubr.bf16.mxu0 0
    %645 = vmatmul.mubr.bf16.gmra.mrb[0].mxu0 %v491
    %v646 = vpop.f32.mrb[0].mxu0
    %v647 = vadd.f32 0.0, %v646
    %v648 = vpop.f32.mrb[0].mxu0
    %v649 = vpop.f32.mrb[0].mxu0
    %v650 = vadd.f32 0.0, %v649
    %v651 = vpop.f32.mrb[0].mxu0
    %652 = vdwg.mxu0
    %v653 = vpack.c.bf16 %v594, %v591
    %v654 = vpack.c.bf16 %v602, %v599
    %v655 = vpack.c.bf16 %v610, %v607
    %v656 = vpack.c.bf16 %v618, %v615
    %v657 = vpack.c.bf16 %v626, %v623
    %v658 = vpack.c.bf16 %v634, %v631
    %v659 = vpack.c.bf16 %v642, %v639
    %v660 = vpack.c.bf16 %v650, %v647
    %661 = vmatprep.subr.bf16.mxu0 0
    %662 = vmatpush1.bf16.msra.mxu0 %v653
    %663 = vmatprep.subr.bf16.mxu0 0
    %664 = vmatpush1.bf16.msra.mxu0 %v654
    %665 = vmatprep.subr.bf16.mxu0 0
    %666 = vmatpush1.bf16.msra.mxu0 %v655
    %667 = vmatprep.subr.bf16.mxu0 0
    %668 = vmatpush1.bf16.msra.mxu0 %v656
    %669 = vmatprep.subr.bf16.mxu0 0
    %670 = vmatpush1.bf16.msra.mxu0 %v657
    %671 = vmatprep.subr.bf16.mxu0 0
    %672 = vmatpush1.bf16.msra.mxu0 %v658
    %673 = vmatprep.subr.bf16.mxu0 0
    %674 = vmatpush1.bf16.msra.mxu0 %v659
    %675 = vmatprep.subr.bf16.mxu0 0
    %676 = vmatpush1.bf16.msra.mxu0 %v660
    %677 = vmatprep.subr.bf16.mxu0 0
    %678 = vmatpush1.bf16.msra.mxu0 0
    %679 = vmatprep.subr.bf16.mxu0 0
    %680 = vmatpush1.bf16.msra.mxu0 0
    %681 = vmatprep.subr.bf16.mxu0 0
    %682 = vmatpush1.bf16.msra.mxu0 0
    %683 = vmatprep.subr.bf16.mxu0 0
    %684 = vmatpush1.bf16.msra.mxu0 0
    %685 = vmatprep.subr.bf16.mxu0 0
    %686 = vmatpush1.bf16.msra.mxu0 0
    %687 = vmatprep.subr.bf16.mxu0 0
    %688 = vmatpush1.bf16.msra.mxu0 0
    %689 = vmatprep.subr.bf16.mxu0 0
    %690 = vmatpush1.bf16.msra.mxu0 0
    %691 = vmatprep.subr.bf16.mxu0 0
    %692 = vmatpush1.bf16.msra.mxu0 0
    %693 = vmatprep.mubr.bf16.mxu0 0
    %694 = vmatmul.mubr.bf16.gmra.mrb[0].mxu0 %v355
    %v695 = vpop.f32.mrb[0].mxu0
    %v696 = vadd.f32 0.0, %v695
    %v697 = vpop.f32.mrb[0].mxu0
    %v698 = vpop.f32.mrb[0].mxu0
    %v699 = vadd.f32 0.0, %v698
    %v700 = vpop.f32.mrb[0].mxu0
    %701 = vmatprep.mubr.bf16.mxu0 0
    %702 = vmatmul.mubr.bf16.gmra.mrb[0].mxu0 %v356
    %v703 = vpop.f32.mrb[0].mxu0
    %v704 = vadd.f32 0.0, %v703
    %v705 = vpop.f32.mrb[0].mxu0
    %v706 = vpop.f32.mrb[0].mxu0
    %v707 = vadd.f32 0.0, %v706
    %v708 = vpop.f32.mrb[0].mxu0
    %709 = vmatprep.mubr.bf16.mxu0 0
    %710 = vmatmul.mubr.bf16.gmra.mrb[0].mxu0 %v357
    %v711 = vpop.f32.mrb[0].mxu0
    %v712 = vadd.f32 0.0, %v711
    %v713 = vpop.f32.mrb[0].mxu0
    %v714 = vpop.f32.mrb[0].mxu0
    %v715 = vadd.f32 0.0, %v714
    %v716 = vpop.f32.mrb[0].mxu0
    %717 = vmatprep.mubr.bf16.mxu0 0
    %718 = vmatmul.mubr.bf16.gmra.mrb[0].mxu0 %v358
    %v719 = vpop.f32.mrb[0].mxu0
    %v720 = vadd.f32 0.0, %v719
    %v721 = vpop.f32.mrb[0].mxu0
    %v722 = vpop.f32.mrb[0].mxu0
    %v723 = vadd.f32 0.0, %v722
    %v724 = vpop.f32.mrb[0].mxu0
    %725 = vmatprep.mubr.bf16.mxu0 0
    %726 = vmatmul.mubr.bf16.gmra.mrb[0].mxu0 %v359
    %v727 = vpop.f32.mrb[0].mxu0
    %v728 = vadd.f32 0.0, %v727
    %v729 = vpop.f32.mrb[0].mxu0
    %v730 = vpop.f32.mrb[0].mxu0
    %v731 = vadd.f32 0.0, %v730
    %v732 = vpop.f32.mrb[0].mxu0
    %733 = vmatprep.mubr.bf16.mxu0 0
    %734 = vmatmul.mubr.bf16.gmra.mrb[0].mxu0 %v360
    %v735 = vpop.f32.mrb[0].mxu0
    %v736 = vadd.f32 0.0, %v735
    %v737 = vpop.f32.mrb[0].mxu0
    %v738 = vpop.f32.mrb[0].mxu0
    %v739 = vadd.f32 0.0, %v738
    %v740 = vpop.f32.mrb[0].mxu0
    %741 = vmatprep.mubr.bf16.mxu0 0
    %742 = vmatmul.mubr.bf16.gmra.mrb[0].mxu0 %v361
    %v743 = vpop.f32.mrb[0].mxu0
    %v744 = vadd.f32 0.0, %v743
    %v745 = vpop.f32.mrb[0].mxu0
    %v746 = vpop.f32.mrb[0].mxu0
    %v747 = vadd.f32 0.0, %v746
    %v748 = vpop.f32.mrb[0].mxu0
    %749 = vmatprep.mubr.bf16.mxu0 0
    %750 = vmatmul.mubr.bf16.gmra.mrb[0].mxu0 %v362
    %v751 = vpop.f32.mrb[0].mxu0
    %v752 = vadd.f32 0.0, %v751
    %v753 = vpop.f32.mrb[0].mxu0
    %v754 = vpop.f32.mrb[0].mxu0
    %v755 = vadd.f32 0.0, %v754
    %v756 = vpop.f32.mrb[0].mxu0
    %757 = vdwg.mxu0
    %758 = vst [vmem:[#allocation10] sm:$0xff] %v696
    %759 = vst [vmem:[#allocation10 + $0x8] sm:$0xff] %v699
    %760 = vst [vmem:[#allocation10 + $0x10] sm:$0xff] %v704
    %761 = vst [vmem:[#allocation10 + $0x18] sm:$0xff] %v707
    %762 = vst [vmem:[#allocation10 + $0x20] sm:$0xff] %v712
    %763 = vst [vmem:[#allocation10 + $0x28] sm:$0xff] %v715
    %764 = vst [vmem:[#allocation10 + $0x30] sm:$0xff] %v720
    %765 = vst [vmem:[#allocation10 + $0x38] sm:$0xff] %v723
    %766 = vst [vmem:[#allocation10 + $0x40] sm:$0xff] %v728
    %767 = vst [vmem:[#allocation10 + $0x48] sm:$0xff] %v731
    %768 = vst [vmem:[#allocation10 + $0x50] sm:$0xff] %v736
    %769 = vst [vmem:[#allocation10 + $0x58] sm:$0xff] %v739
    %770 = vst [vmem:[#allocation10 + $0x60] sm:$0xff] %v744
    %771 = vst [vmem:[#allocation10 + $0x68] sm:$0xff] %v747
    %772 = vst [vmem:[#allocation10 + $0x70] sm:$0xff] %v752
    %773 = vst [vmem:[#allocation10 + $0x78] sm:$0xff] %v755
    // Predicated region
    $region34: #{tpu_custom_call.1} parent=1 // pred_check
      _
    $region35: #{tpu_custom_call.1} parent=1 // pred_check_branch
      %775 = sbr.rel (0) target = $region37
    $region36: #{tpu_custom_call.1} parent=1 // pred_region
      %s777 = ssub.s32 2048, 2048
      %778 = vsyncadd [#allocation4], %s777
      %s779 = sshll.u32 [#allocation10], 4
      %s780 = int_to_ptr.vmem [resolvable:$true] %s779
      %785 = dma.vmem_to_hbm [thread:$0]  %s780, 2048, %s4, [#allocation4], 128, 128, 8
    $region37: #{tpu_custom_call.1} parent=1 // pred_fallthru
      _
    // Predicated region
    $region38: #{tpu_custom_call.1} parent=1 // pred_check
      _
    $region39: #{tpu_custom_call.1} parent=1 // pred_check_branch
      %787 = sbr.rel (0) target = $region41
    $region40: #{tpu_custom_call.1} parent=1 // pred_region
      %788 = dma.done [#allocation4], 2048
    $region41: #{tpu_custom_call.1} parent=1 // pred_fallthru
      _
    %789 = vsyncpa [#allocation3], 1
    %790 = vsyncpa [#allocation6], 1
    %791 = vsyncpa [#allocation9], 1
    %792 = vsyncpa [#allocation4], 1

</llo_original>
